<compile_context>
chip_gen: v7x
topology: tpu7x:2x2x1
jax: 0.10.0
libtpu: 0.0.40
codegen_flags: <defaults>
</compile_context>

<pallas_src>
import jax
import jax.numpy as jnp
from jax.experimental import pallas as pl
from jax.experimental.pallas import tpu as pltpu

EPS = 1e-6


def _normalize_rows(acc):
    """Row-wise L2 normalize an f32 tile; clamping sumsq at EPS^2 is
    equivalent to clamping the norm at EPS (torch.clamp(norm, min=EPS))."""
    sumsq = jnp.sum(acc * acc, axis=-1, keepdims=True)
    inv = jax.lax.rsqrt(jnp.maximum(sumsq, EPS * EPS))  # EUP slot, ~free
    return acc * inv


# ---------- Fast path: E fully VMEM-resident, no K-reduction grid axis ------
def _resident_kernel(f_ref, e_ref, o_ref):
    acc = jnp.dot(f_ref[...], e_ref[...], preferred_element_type=jnp.float32)
    o_ref[...] = _normalize_rows(acc).astype(o_ref.dtype)


# ---------- Fallback: K tiled; f32 output accumulates directly in o_ref -----
def _tiled_kernel_f32out(f_ref, e_ref, o_ref):
    k = pl.program_id(1)

    @pl.when(k == 0)
    def _():
        o_ref[...] = jnp.zeros_like(o_ref)

    o_ref[...] += jnp.dot(f_ref[...], e_ref[...], preferred_element_type=jnp.float32)

    @pl.when(k == pl.num_programs(1) - 1)
    def _():
        o_ref[...] = _normalize_rows(o_ref[...])


# ---------- Fallback for narrow output dtypes: f32 scratch accumulator ------
def _tiled_kernel_acc(f_ref, e_ref, o_ref, acc_ref):
    k = pl.program_id(1)

    @pl.when(k == 0)
    def _():
        acc_ref[...] = jnp.zeros_like(acc_ref)

    acc_ref[...] += jnp.dot(f_ref[...], e_ref[...], preferred_element_type=jnp.float32)

    @pl.when(k == pl.num_programs(1) - 1)
    def _():
        o_ref[...] = _normalize_rows(acc_ref[...]).astype(o_ref.dtype)


# ----------------------------- sizing helpers --------------------------------
def _vmem_capacity_bytes():
    """Physical VMEM per TensorCore; conservative 64 MiB if the query fails."""
    try:
        cap = int(pltpu.get_tpu_info().vmem_capacity_bytes)
        if cap > 0:
            return cap
    except Exception:
        pass
    return 64 * 1024 * 1024


def _divisor_candidates(n, cands):
    out = [c for c in cands if c <= n and n % c == 0]
    return out or [n]


def _resident_bytes(tn, K, D, f_item, e_item, o_item, e_bufs):
    return (2 * tn * K * f_item          # double-buffered F row tiles
            + e_bufs * K * D * e_item    # E (single-buffered when supported)
            + 2 * tn * D * o_item        # double-buffered output tiles
            + 2 * tn * D * 4)            # f32 dot result + normalize temporaries


def _tiled_bytes(tn, tk, D, f_item, e_item, o_item, use_f32_out):
    b = (2 * tn * tk * f_item
         + 2 * tk * D * e_item
         + 2 * tn * D * o_item
         + 2 * tn * D * 4)               # f32 partial / normalize temporaries
    if not use_f32_out:
        b += tn * D * 4                  # f32 scratch accumulator
    return b


def _make_invariant_e_spec(K, D):
    """Grid-invariant E spec; single-buffer it when the API supports it."""
    if hasattr(pl, "Buffered"):
        try:
            spec = pl.BlockSpec((K, D), lambda i: (0, 0),
                                pipeline_mode=pl.Buffered(1))
            return spec, 1
        except TypeError:
            pass
    return pl.BlockSpec((K, D), lambda i: (0, 0)), 2


def _pick_resident_tn(N, K, D, f_item, e_item, o_item, e_bufs, budget,
                      prefer_two_tiles):
    cands = _divisor_candidates(N, (1024, 512, 256, 128, 64, 32, 16, 8))

    def fits(c):
        return _resident_bytes(c, K, D, f_item, e_item, o_item, e_bufs) <= budget

    if prefer_two_tiles:  # 2-TC generations: let the N axis shard across cores
        for c in cands:
            if N // c >= 2 and fits(c):
                return c
    for c in cands:       # single-TC: largest fitting tile wins
        if fits(c):
            return c
    return None           # even the smallest row tile + resident E won't fit


def _pick_fallback_tiles(N, K, D, f_item, e_item, o_item, use_f32_out, budget):
    tn_cands = _divisor_candidates(N, (512, 256, 128, 64, 32, 16, 8))
    tk_cands = _divisor_candidates(K, (512, 256, 128))  # tk capped at 512
    for tn in tn_cands:          # largest tn first: amortize E re-streaming
        for tk in tk_cands:
            if _tiled_bytes(tn, tk, D, f_item, e_item, o_item,
                            use_f32_out) <= budget:
                return tn, tk
    return tn_cands[-1], tk_cands[-1]


# ------------------------------ main wrapper ---------------------------------
def vertex_feature_embedder_forward(features, embeddings, *, tn=None, tk=None,
                                    matmul_dtype=None):
    """normalize_embeddings(features @ embeddings) via Pallas TPU kernels."""
    N, K = features.shape
    K2, D = embeddings.shape
    assert K == K2, "feature_dim mismatch between features and embeddings"
    out_dtype = features.dtype

    if matmul_dtype is not None:
        # bf16 MXU feed (accuracy trade-off); row normalization absorbs scale.
        features = features.astype(matmul_dtype)
        embeddings = embeddings.astype(matmul_dtype)

    # Lane-dense output: pad D to a multiple of 128. Zero E columns produce
    # zero output columns, so row norms (and thus the result) are unchanged.
    D_pad = max(128, ((D + 127) // 128) * 128)
    if D_pad != D:
        embeddings = jnp.pad(embeddings, ((0, 0), (0, D_pad - D)))

    out = _forward_padded(features, embeddings, N, K, D_pad, out_dtype, tn, tk)
    if D_pad != D:
        out = out[:, :D]
    return out


def _forward_padded(features, embeddings, N, K, D, out_dtype, tn, tk):
    f_item = jnp.dtype(features.dtype).itemsize
    e_item = jnp.dtype(embeddings.dtype).itemsize
    o_item = jnp.dtype(out_dtype).itemsize

    vmem_cap = _vmem_capacity_bytes()
    budget = int(0.72 * vmem_cap)                       # ~46 MiB v7x, ~92 MiB v5e/v6e
    prefer_two_tiles = vmem_cap <= 96 * 1024 * 1024     # small VMEM => likely 2 TCs (v7x)

    out_shape = jax.ShapeDtypeStruct((N, D), out_dtype)
    cost = pl.CostEstimate(
        flops=2 * N * K * D,
        transcendentals=N,
        bytes_accessed=N * K * f_item + K * D * e_item + N * D * o_item,
    )

    # ----- Fast path: whole E resident in VMEM, grid = (N // tn,) -----------
    if tk is None:
        e_spec, e_bufs = _make_invariant_e_spec(K, D)
        tn_res = tn
        if tn_res is None:
            tn_res = _pick_resident_tn(N, K, D, f_item, e_item, o_item, e_bufs,
                                       budget, prefer_two_tiles)
        elif _resident_bytes(tn_res, K, D, f_item, e_item, o_item, e_bufs) > budget:
            tn_res = None
        if tn_res is not None and N % tn_res == 0:
            footprint = _resident_bytes(tn_res, K, D, f_item, e_item, o_item, e_bufs)
            vmem_limit = int(min(vmem_cap, max(32 << 20, footprint + (8 << 20))))
            return pl.pallas_call(
                _resident_kernel,
                out_shape=out_shape,
                grid_spec=pltpu.PrefetchScalarGridSpec(
                    num_scalar_prefetch=0,
                    grid=(N // tn_res,),
                    in_specs=[
                        pl.BlockSpec((tn_res, K), lambda i: (i, 0)),  # F row tile
                        e_spec,                                       # E, DMA'd once
                    ],
                    out_specs=pl.BlockSpec((tn_res, D), lambda i: (i, 0)),
                ),
                compiler_params=pltpu.CompilerParams(
                    dimension_semantics=("parallel",),
                    vmem_limit_bytes=vmem_limit,
                ),
                cost_estimate=cost,
            )(features, embeddings)

    # ----- Fallback: tile K (reduction axis last) ----------------------------
    use_f32_out = jnp.dtype(out_dtype) == jnp.dtype(jnp.float32)
    tn_fb, tk_fb = _pick_fallback_tiles(N, K, D, f_item, e_item, o_item,
                                        use_f32_out, budget)
    tn = tn if tn is not None else tn_fb
    tk = tk if tk is not None else tk_fb
    assert N % tn == 0, "N must be divisible by the row tile"
    assert K % tk == 0, "K must be divisible by the reduction tile"

    kernel = _tiled_kernel_f32out if use_f32_out else _tiled_kernel_acc
    scratch = [] if use_f32_out else [pltpu.VMEM((tn, D), jnp.float32)]
    footprint = _tiled_bytes(tn, tk, D, f_item, e_item, o_item, use_f32_out)
    vmem_limit = int(min(vmem_cap, max(32 << 20, footprint + (8 << 20))))

    return pl.pallas_call(
        kernel,
        out_shape=out_shape,
        grid_spec=pltpu.PrefetchScalarGridSpec(
            num_scalar_prefetch=0,
            grid=(N // tn, K // tk),
            in_specs=[
                pl.BlockSpec((tn, tk), lambda i, k: (i, k)),  # F tile
                pl.BlockSpec((tk, D), lambda i, k: (k, 0)),   # E tile
            ],
            out_specs=pl.BlockSpec((tn, D), lambda i, k: (i, 0)),
            scratch_shapes=scratch,
        ),
        compiler_params=pltpu.CompilerParams(
            dimension_semantics=("parallel", "arbitrary"),
            vmem_limit_bytes=vmem_limit,
        ),
        cost_estimate=cost,
    )(features, embeddings)


def _reference(features, embeddings):
    out = jnp.dot(features.astype(jnp.float32), embeddings.astype(jnp.float32))
    norm = jnp.sqrt(jnp.sum(out * out, axis=-1, keepdims=True))
    norm = jnp.maximum(norm, EPS)
    return (out / norm).astype(features.dtype)


if __name__ == "__main__":
    # Module shapes: num_vertices=N, feature_dim=K, embed_dim=D.
    N, K, D = 256, 256, 128

    # reset_parameters() zeros both tensors; for a non-degenerate test we
    # initialize deterministically from PRNGKey(0) instead (synthetic weights).
    # TODO(synk): load()/reset_parameters() are host-side state management with
    # no Pallas equivalent; only the forward pass is implemented here.
    key = jax.random.PRNGKey(0)
    kf, ke = jax.random.split(key)
    features = jax.random.normal(kf, (N, K), dtype=jnp.float32)
    embeddings = jax.random.normal(ke, (K, D), dtype=jnp.float32)

    out = vertex_feature_embedder_forward(features, embeddings)
    out = jax.block_until_ready(out)

    ref = _reference(features, embeddings)
    assert out.shape == (N, D)
    assert jnp.allclose(out, ref, atol=1e-5, rtol=1e-5), "mismatch vs reference"

    # Exercise the K-tiled fallback path once (forced small tiles).
    out2 = jax.block_until_ready(
        vertex_feature_embedder_forward(features, embeddings, tn=128, tk=128)
    )
    assert jnp.allclose(out2, ref, atol=1e-5, rtol=1e-5), "tiled path mismatch"

    # Exercise the ragged-D (lane padding) path once.
    N3, K3, D3 = 64, 128, 96
    k3f, k3e = jax.random.split(jax.random.PRNGKey(0), 2)
    f3 = jax.random.normal(k3f, (N3, K3), dtype=jnp.float32)
    e3 = jax.random.normal(k3e, (K3, D3), dtype=jnp.float32)
    out3 = jax.block_until_ready(vertex_feature_embedder_forward(f3, e3))
    assert out3.shape == (N3, D3)
    assert jnp.allclose(out3, _reference(f3, e3), atol=1e-5, rtol=1e-5), \
        "padded-D path mismatch"

    print("KERNEL_OK")
</pallas_src>

<mosaic_0001>
module attributes {stable_mosaic.version = 11 : i64} {
  func.func @_resident_kernel(%arg0: i32, %arg1: memref<128x256xf32, #tpu.memory_space<vmem>>, %arg2: memref<256x128xf32, #tpu.memory_space<vmem>>, %arg3: memref<128x128xf32, #tpu.memory_space<vmem>>) attributes {dimension_semantics = [#tpu.dimension_semantics<parallel>], iteration_bounds = array<i64: 2>, scalar_prefetch = 0 : i64, scratch_operands = 0 : i64, tpu.core_type = #tpu.core_type<tc>, window_params = [{transform_indices = @transform_0, window_bounds = array<i64: 128, 256>}, {pipeline_mode = #tpu.pipeline_mode<synchronous>, transform_indices = @transform_1, window_bounds = array<i64: 256, 128>}, {transform_indices = @transform_2, window_bounds = array<i64: 128, 128>}]} {
    %c0 = arith.constant 0 : index
    %c0_0 = arith.constant 0 : index
    %0 = vector.load %arg1[%c0, %c0_0] : memref<128x256xf32, #tpu.memory_space<vmem>>, vector<128x256xf32>
    %c0_1 = arith.constant 0 : index
    %c0_2 = arith.constant 0 : index
    %1 = vector.load %arg2[%c0_1, %c0_2] : memref<256x128xf32, #tpu.memory_space<vmem>>, vector<256x128xf32>
    %cst = arith.constant dense<0.000000e+00> : vector<128x128xf32>
    %2 = tpu.matmul %0, %1, %cst {dimension_numbers = #tpu.dot_dimension_numbers<[1], [0], [0], [1], [0, 0, 1, 1], [], []>} : vector<128x256xf32>, vector<256x128xf32>, vector<128x128xf32> -> vector<128x128xf32>
    %3 = arith.mulf %2, %2 : vector<128x128xf32>
    %cst_3 = arith.constant dense<0.000000e+00> : vector<128xf32>
    %4 = vector.multi_reduction <add>, %3, %cst_3 [1] : vector<128x128xf32> to vector<128xf32>
    %5 = vector.shape_cast %4 : vector<128xf32> to vector<128x1xf32>
    %cst_4 = arith.constant 9.99999996E-13 : f32
    %6 = vector.broadcast %cst_4 : f32 to vector<128x1xf32>
    %7 = arith.maximumf %5, %6 : vector<128x1xf32>
    %8 = math.rsqrt %7 : vector<128x1xf32>
    %9 = vector.broadcast %8 : vector<128x1xf32> to vector<128x128xf32>
    %10 = arith.mulf %2, %9 : vector<128x128xf32>
    %c0_5 = arith.constant 0 : index
    %c0_6 = arith.constant 0 : index
    %11 = vector.load %arg3[%c0_5, %c0_6] : memref<128x128xf32, #tpu.memory_space<vmem>>, vector<128x128xf32>
    tpu.vector_store %arg3[%c0_5, %c0_6], %10 {strides = array<i32>} : memref<128x128xf32, #tpu.memory_space<vmem>>, vector<128x128xf32>,
    return
  }
  func.func @transform_0(%arg0: i32) -> (i32, i32) {
    %c0_i32 = arith.constant 0 : i32
    %c0_i32_0 = arith.constant 0 : i32
    return %arg0, %c0_i32 : i32, i32
  }
  func.func @transform_1(%arg0: i32) -> (i32, i32) {
    %c0_i32 = arith.constant 0 : i32
    %c0_i32_0 = arith.constant 0 : i32
    %c0_i32_1 = arith.constant 0 : i32
    return %c0_i32, %c0_i32_0 : i32, i32
  }
  func.func @transform_2(%arg0: i32) -> (i32, i32) {
    %c0_i32 = arith.constant 0 : i32
    %c0_i32_0 = arith.constant 0 : i32
    return %arg0, %c0_i32 : i32, i32
  }
}

</mosaic_0001>

<llo_original>
// kernel: tpu_custom_call.1
$region0: #{tpu_custom_call.1}
  #allocation0 [shape = 'u32[]', space=smem, size = 0x4, offset = 0x4, fixed_abs, tag = 'smem constant byte address 0x4 - core index']
  #allocation1 [shape = 'u32[144,128]{1,0:T(1,128)}', space=vmem, size = 0x12000, scoped, tag = 'internal scratch']
  %s0 = inlined_call_operand.hbm [shape: f32[256,256], index: 0, kind: input, shape index: {}]
  %s1 = inlined_call_operand.hbm [shape: f32[256,128], index: 1, kind: input, shape index: {}]
  %s2 = inlined_call_operand.hbm [shape: f32[256,128], index: 2, kind: output, shape index: {}]
  %s3 = sld [smem:[#allocation0]]
  $region49: #{tpu_custom_call.1} parent=0
    _
  %s5 = ssub.s32 1, %s3
  %s6 = scalar_select 0, %s5, %s3
  $region1: #{tpu_custom_call.1} parent=0
    #allocation2 [shape = 'u8[262144]{0}', space=vmem, size = 0x40000, scoped, tag = 'input window, operand 0']
    #allocation3 [shape = 's32[2]{0}', space=sflag, size = 0x8, scoped, tag = 'scoped memory for tpu_custom_call.1']
    #allocation4 [shape = 's32[2]{0}', space=sflag, size = 0x8, scoped, tag = 'scoped memory for tpu_custom_call.1']
    #allocation5 [shape = 'u8[131072]{0}', space=vmem, size = 0x20000, scoped, tag = 'input window, operand 1, single buffered']
    #allocation6 [shape = 's32[1]{0}', space=sflag, size = 0x4, scoped, tag = 'scoped memory for tpu_custom_call.1']
    #allocation7 [shape = 'u8[131072]{0}', space=vmem, size = 0x20000, scoped, tag = 'output window, operand 0']
    %7 = vsyncpa [#allocation3], 0
    %s8 = scalar_lea.sflag [#allocation3], 1
    %9 = vsyncpa %s8, 0
    %10 = vsyncpa [#allocation6], 0
    %11 = vsyncpa [#allocation4], 0
    %s12 = scalar_lea.sflag [#allocation4], 1
    %13 = vsyncpa %s12, 0
    loop: start=0, step=1, limit=4
    $region2: #{tpu_custom_call.1} parent=1 // loop_pre_header
      _
    $region3: #{tpu_custom_call.1} parent=1 // loop_header
      %s15 = sphi 0, %s19
      %p16 = scmp.ge.s32.totalorder %s15, 4
      %s25 = sphi 0, %s27
      %s28 = sphi 0, %s25
      %s29 = sphi 0, %s28
      %s45 = sphi 0, %s29
      %s49 = sphi 0, %s49
      %s51 = sphi 0, %s49
      %s52 = sphi 0, %s51
      %s66 = sphi 0, %s52
      %s72 = sphi 0, %s74
      %s75 = sphi 0, %s72
      %s76 = sphi 0, %s75
      %s92 = sphi 0, %s76
    $region4: #{tpu_custom_call.1} parent=1 // loop_header_branch
      %18 = sbr.rel (%p16) target = $region8
    $region5: #{tpu_custom_call.1} parent=1 // loop_body
      %s20 = ssub.s32 %s15, 1
      %s21 = ssub.s32 %s15, 2
      %s22 = sadd.s32 %s15, 1
      %s23 = ssub.s32 %s15, %s22
      %p24 = scmp.eq.s32.totalorder %s23, 0
      %s26 = sadd.s32 %s25, 1
      %s27 = scalar_select %p24, %s25, %s26
      %p30 = pneg %p24
      %p31 = scmp.eq.s32.totalorder %s15, 1
      %p32 = por %p30, %p31
      %p33 = scmp.ne.s32.totalorder %s25, %s28
      %p34 = scmp.eq.s32.totalorder %s15, 0
      %p35 = por %p33, %p34
      %p36 = scmp.ne.s32.totalorder %s25, %s28
      %p37 = scmp.eq.s32.totalorder %s20, 1
      %p38 = por %p36, %p37
      %p39 = scmp.ne.s32.totalorder %s28, %s29
      %p40 = scmp.eq.s32.totalorder %s20, 0
      %p41 = por %p39, %p40
      %p42 = scmp.ne.s32.totalorder %s28, %s29
      %p43 = scmp.eq.s32.totalorder %s21, 1
      %p44 = por %p42, %p43
      %p46 = scmp.ne.s32.totalorder %s29, %s45
      %p47 = scmp.eq.s32.totalorder %s21, 0
      %p48 = por %p46, %p47
      %s50 = sadd.s32 %s49, 1
      %p53 = scmp.eq.s32.totalorder %s15, 1
      %p54 = scmp.ne.s32.totalorder %s49, %s51
      %p55 = scmp.eq.s32.totalorder %s15, 0
      %p56 = por %p54, %p55
      %p57 = scmp.ne.s32.totalorder %s49, %s51
      %p58 = scmp.eq.s32.totalorder %s20, 1
      %p59 = por %p57, %p58
      %p60 = scmp.ne.s32.totalorder %s51, %s52
      %p61 = scmp.eq.s32.totalorder %s20, 0
      %p62 = por %p60, %p61
      %p63 = scmp.ne.s32.totalorder %s51, %s52
      %p64 = scmp.eq.s32.totalorder %s21, 1
      %p65 = por %p63, %p64
      %p67 = scmp.ne.s32.totalorder %s52, %s66
      %p68 = scmp.eq.s32.totalorder %s21, 0
      %p69 = por %p67, %p68
      %s70 = ssub.s32 %s15, %s22
      %p71 = scmp.eq.s32.totalorder %s70, 0
      %s73 = sadd.s32 %s72, 1
      %s74 = scalar_select %p71, %s72, %s73
      %p77 = pneg %p71
      %p78 = scmp.eq.s32.totalorder %s15, 1
      %p79 = por %p77, %p78
      %p80 = scmp.ne.s32.totalorder %s72, %s75
      %p81 = scmp.eq.s32.totalorder %s15, 0
      %p82 = por %p80, %p81
      %p83 = scmp.ne.s32.totalorder %s72, %s75
      %p84 = scmp.eq.s32.totalorder %s20, 1
      %p85 = por %p83, %p84
      %p86 = scmp.ne.s32.totalorder %s75, %s76
      %p87 = scmp.eq.s32.totalorder %s20, 0
      %p88 = por %p86, %p87
      %p89 = scmp.ne.s32.totalorder %s75, %s76
      %p90 = scmp.eq.s32.totalorder %s21, 1
      %p91 = por %p89, %p90
      %p93 = scmp.ne.s32.totalorder %s76, %s92
      %p94 = scmp.eq.s32.totalorder %s21, 0
      %p95 = por %p93, %p94
      %p96 = scmp.le.s32.totalorder 1, %s15
      %p97 = scmp.lt.s32.totalorder %s15, 3
      %p98 = pnand %p96, %p97
      %p99 = pneg %p98
      // Predicated region
      $region9: #{tpu_custom_call.1} parent=5 // pred_check
        _
      $region10: #{tpu_custom_call.1} parent=5 // pred_check_branch
        %101 = sbr.rel (%p98) target = $region12
      $region11: #{tpu_custom_call.1} parent=5 // pred_region
        %s102 = ssub.s32 %s15, 1
        // Predicated region
        $region13: #{tpu_custom_call.1} parent=11 // pred_check
          %p103 = pneg %p62
        $region14: #{tpu_custom_call.1} parent=11 // pred_check_branch
          %105 = sbr.rel (%p103) target = $region16
        $region15: #{tpu_custom_call.1} parent=11 // pred_region
          %s107 = ssub.s32 4096, 4096
          %108 = vsyncadd [#allocation6], %s107
          %s109 = sshll.u32 [#allocation5], 4
          %s110 = int_to_ptr.vmem [resolvable:$true] %s109
          %115 = dma.hbm_to_vmem [thread:$0]  %s1, 4096, %s110, [#allocation6], 128, 128, 8
        $region16: #{tpu_custom_call.1} parent=11 // pred_fallthru
          _
      $region12: #{tpu_custom_call.1} parent=5 // pred_fallthru
        _
      %p116 = scmp.lt.s32.totalorder %s15, 2
      // Predicated region
      $region17: #{tpu_custom_call.1} parent=5 // pred_check
        %p117 = pneg %p116
      $region18: #{tpu_custom_call.1} parent=5 // pred_check_branch
        %119 = sbr.rel (%p117) target = $region20
      $region19: #{tpu_custom_call.1} parent=5 // pred_region
        // Predicated region
        $region21: #{tpu_custom_call.1} parent=19 // pred_check
          %p120 = pneg %p35
        $region22: #{tpu_custom_call.1} parent=19 // pred_check_branch
          %122 = sbr.rel (%p120) target = $region24
        $region23: #{tpu_custom_call.1} parent=19 // pred_region
          %s123 = sand.u32 %s25, 1
          %s124 = scalar_lea.sflag [#allocation3], %s123
          %s125 = sand.u32 %s25, 1
          %s126 = smul.addr %s125, 256
          %s127 = scalar_lea.vmem [#allocation2], %s126
          %s128 = smul.u32 16, %s15
          %s130 = ssub.s32 4096, 4096
          %131 = vsyncadd %s124, %s130
          %s132 = smul.addr %s128, 2
          %s133 = smul.addr %s132, 128
          %s134 = scalar_lea.hbm %s0, %s133
          %s135 = sshll.u32 %s127, 4
          %s136 = int_to_ptr.vmem [resolvable:$true] %s135
          %141 = dma.hbm_to_vmem [thread:$0]  %s134, 4096, %s136, %s124, 256, 256, 16
        $region24: #{tpu_custom_call.1} parent=19 // pred_fallthru
          _
      $region20: #{tpu_custom_call.1} parent=5 // pred_fallthru
        _
      %p142 = scmp.le.s32.totalorder 1, %s15
      %p143 = scmp.lt.s32.totalorder %s15, 3
      %p144 = pnand %p142, %p143
      %p145 = pneg %p144
      // Predicated region
      $region25: #{tpu_custom_call.1} parent=5 // pred_check
        _
      $region26: #{tpu_custom_call.1} parent=5 // pred_check_branch
        %147 = sbr.rel (%p144) target = $region28
      $region27: #{tpu_custom_call.1} parent=5 // pred_region
        %s148 = ssub.s32 %s15, 1
        %s149 = sand.u32 %s28, 1
        %s150 = scalar_lea.sflag [#allocation3], %s149
        %s151 = sand.u32 %s28, 1
        %s152 = smul.addr %s151, 256
        %s153 = scalar_lea.vmem [#allocation2], %s152
        // Predicated region
        $region29: #{tpu_custom_call.1} parent=27 // pred_check
          %p154 = pneg %p41
        $region30: #{tpu_custom_call.1} parent=27 // pred_check_branch
          %156 = sbr.rel (%p154) target = $region32
        $region31: #{tpu_custom_call.1} parent=27 // pred_region
          %157 = dma.done %s150, 4096
        $region32: #{tpu_custom_call.1} parent=27 // pred_fallthru
          _
        // Predicated region
        $region33: #{tpu_custom_call.1} parent=27 // pred_check
          %p158 = pneg %p62
        $region34: #{tpu_custom_call.1} parent=27 // pred_check_branch
          %160 = sbr.rel (%p158) target = $region36
        $region35: #{tpu_custom_call.1} parent=27 // pred_region
          %161 = dma.done [#allocation6], 4096
        $region36: #{tpu_custom_call.1} parent=27 // pred_fallthru
          _
        %s162 = sand.u32 %s28, 1
        %s163 = scalar_lea.sflag [#allocation3], %s162
        %s164 = sand.u32 %s28, 1
        %s165 = smul.addr %s164, 256
        %s166 = scalar_lea.vmem [#allocation2], %s165
        %p167 = pneg %p41
        %p168 = pneg %p38
        %p169 = pneg %p62
        %p170 = pneg %p59
        %p171 = pneg %p88
        %p172 = pneg %p85
        %s173 = sand.u32 %s75, 1
        %s174 = scalar_lea.sflag [#allocation4], %s173
        %s175 = sand.u32 %s75, 1
        %s176 = smul.addr %s175, 128
        %s177 = scalar_lea.vmem [#allocation7], %s176
        %s178 = smul.u32 16, %s20
        %s179 = smul.u32 16, %s20
        %v180 = vld [vmem:[%s153] sm:$0xff]
        %v181 = vld [vmem:[%s153 + $0x8] sm:$0xff]
        %v182 = vld [vmem:[%s153 + $0x10] sm:$0xff]
        %v183 = vld [vmem:[%s153 + $0x18] sm:$0xff]
        %v184 = vld [vmem:[%s153 + $0x20] sm:$0xff]
        %v185 = vld [vmem:[%s153 + $0x28] sm:$0xff]
        %v186 = vld [vmem:[%s153 + $0x30] sm:$0xff]
        %v187 = vld [vmem:[%s153 + $0x38] sm:$0xff]
        %v188 = vld [vmem:[%s153 + $0x40] sm:$0xff]
        %v189 = vld [vmem:[%s153 + $0x48] sm:$0xff]
        %v190 = vld [vmem:[%s153 + $0x50] sm:$0xff]
        %v191 = vld [vmem:[%s153 + $0x58] sm:$0xff]
        %v192 = vld [vmem:[%s153 + $0x60] sm:$0xff]
        %v193 = vld [vmem:[%s153 + $0x68] sm:$0xff]
        %v194 = vld [vmem:[%s153 + $0x70] sm:$0xff]
        %v195 = vld [vmem:[%s153 + $0x78] sm:$0xff]
        %v196 = vld [vmem:[%s153 + $0x80] sm:$0xff]
        %v197 = vld [vmem:[%s153 + $0x88] sm:$0xff]
        %v198 = vld [vmem:[%s153 + $0x90] sm:$0xff]
        %v199 = vld [vmem:[%s153 + $0x98] sm:$0xff]
        %v200 = vld [vmem:[%s153 + $0xa0] sm:$0xff]
        %v201 = vld [vmem:[%s153 + $0xa8] sm:$0xff]
        %v202 = vld [vmem:[%s153 + $0xb0] sm:$0xff]
        %v203 = vld [vmem:[%s153 + $0xb8] sm:$0xff]
        %v204 = vld [vmem:[%s153 + $0xc0] sm:$0xff]
        %v205 = vld [vmem:[%s153 + $0xc8] sm:$0xff]
        %v206 = vld [vmem:[%s153 + $0xd0] sm:$0xff]
        %v207 = vld [vmem:[%s153 + $0xd8] sm:$0xff]
        %v208 = vld [vmem:[%s153 + $0xe0] sm:$0xff]
        %v209 = vld [vmem:[%s153 + $0xe8] sm:$0xff]
        %v210 = vld [vmem:[%s153 + $0xf0] sm:$0xff]
        %v211 = vld [vmem:[%s153 + $0xf8] sm:$0xff]
        %v212 = vld [vmem:[#allocation5] sm:$0xff]
        %v213 = vld [vmem:[#allocation5 + $0x8] sm:$0xff]
        %v214 = vld [vmem:[#allocation5 + $0x10] sm:$0xff]
        %v215 = vld [vmem:[#allocation5 + $0x18] sm:$0xff]
        %v216 = vld [vmem:[#allocation5 + $0x20] sm:$0xff]
        %v217 = vld [vmem:[#allocation5 + $0x28] sm:$0xff]
        %v218 = vld [vmem:[#allocation5 + $0x30] sm:$0xff]
        %v219 = vld [vmem:[#allocation5 + $0x38] sm:$0xff]
        %v220 = vld [vmem:[#allocation5 + $0x40] sm:$0xff]
        %v221 = vld [vmem:[#allocation5 + $0x48] sm:$0xff]
        %v222 = vld [vmem:[#allocation5 + $0x50] sm:$0xff]
        %v223 = vld [vmem:[#allocation5 + $0x58] sm:$0xff]
        %v224 = vld [vmem:[#allocation5 + $0x60] sm:$0xff]
        %v225 = vld [vmem:[#allocation5 + $0x68] sm:$0xff]
        %v226 = vld [vmem:[#allocation5 + $0x70] sm:$0xff]
        %v227 = vld [vmem:[#allocation5 + $0x78] sm:$0xff]
        %v228 = vld [vmem:[#allocation5 + $0x80] sm:$0xff]
        %v229 = vld [vmem:[#allocation5 + $0x88] sm:$0xff]
        %v230 = vld [vmem:[#allocation5 + $0x90] sm:$0xff]
        %v231 = vld [vmem:[#allocation5 + $0x98] sm:$0xff]
        %v232 = vld [vmem:[#allocation5 + $0xa0] sm:$0xff]
        %v233 = vld [vmem:[#allocation5 + $0xa8] sm:$0xff]
        %v234 = vld [vmem:[#allocation5 + $0xb0] sm:$0xff]
        %v235 = vld [vmem:[#allocation5 + $0xb8] sm:$0xff]
        %v236 = vld [vmem:[#allocation5 + $0xc0] sm:$0xff]
        %v237 = vld [vmem:[#allocation5 + $0xc8] sm:$0xff]
        %v238 = vld [vmem:[#allocation5 + $0xd0] sm:$0xff]
        %v239 = vld [vmem:[#allocation5 + $0xd8] sm:$0xff]
        %v240 = vld [vmem:[#allocation5 + $0xe0] sm:$0xff]
        %v241 = vld [vmem:[#allocation5 + $0xe8] sm:$0xff]
        %v242 = vld [vmem:[#allocation5 + $0xf0] sm:$0xff]
        %v243 = vld [vmem:[#allocation5 + $0xf8] sm:$0xff]
        %244 = vmatprep.subr.mxu0 0.0
        %245 = vmatpush1.msra.mxu0 %v212
        %246 = vmatprep.subr.mxu0 0.0
        %247 = vmatpush1.msra.mxu0 %v213
        %248 = vmatprep.subr.mxu0 0.0
        %249 = vmatpush1.msra.mxu0 %v214
        %250 = vmatprep.subr.mxu0 0.0
        %251 = vmatpush1.msra.mxu0 %v215
        %252 = vmatprep.subr.mxu0 0.0
        %253 = vmatpush1.msra.mxu0 %v216
        %254 = vmatprep.subr.mxu0 0.0
        %255 = vmatpush1.msra.mxu0 %v217
        %256 = vmatprep.subr.mxu0 0.0
        %257 = vmatpush1.msra.mxu0 %v218
        %258 = vmatprep.subr.mxu0 0.0
        %259 = vmatpush1.msra.mxu0 %v219
        %260 = vmatprep.subr.mxu0 0.0
        %261 = vmatpush1.msra.mxu0 %v220
        %262 = vmatprep.subr.mxu0 0.0
        %263 = vmatpush1.msra.mxu0 %v221
        %264 = vmatprep.subr.mxu0 0.0
        %265 = vmatpush1.msra.mxu0 %v222
        %266 = vmatprep.subr.mxu0 0.0
        %267 = vmatpush1.msra.mxu0 %v223
        %268 = vmatprep.subr.mxu0 0.0
        %269 = vmatpush1.msra.mxu0 %v224
        %270 = vmatprep.subr.mxu0 0.0
        %271 = vmatpush1.msra.mxu0 %v225
        %272 = vmatprep.subr.mxu0 0.0
        %273 = vmatpush1.msra.mxu0 %v226
        %274 = vmatprep.subr.mxu0 0.0
        %275 = vmatpush1.msra.mxu0 %v227
        %276 = vmatprep.subr.mxu0 0.0
        %277 = vmatpush1.msra.mxu0 %v228
        %278 = vmatprep.subr.mxu0 0.0
        %279 = vmatpush1.msra.mxu0 %v229
        %280 = vmatprep.subr.mxu0 0.0
        %281 = vmatpush1.msra.mxu0 %v230
        %282 = vmatprep.subr.mxu0 0.0
        %283 = vmatpush1.msra.mxu0 %v231
        %284 = vmatprep.subr.mxu0 0.0
        %285 = vmatpush1.msra.mxu0 %v232
        %286 = vmatprep.subr.mxu0 0.0
        %287 = vmatpush1.msra.mxu0 %v233
        %288 = vmatprep.subr.mxu0 0.0
        %289 = vmatpush1.msra.mxu0 %v234
        %290 = vmatprep.subr.mxu0 0.0
        %291 = vmatpush1.msra.mxu0 %v235
        %292 = vmatprep.subr.mxu0 0.0
        %293 = vmatpush1.msra.mxu0 %v236
        %294 = vmatprep.subr.mxu0 0.0
        %295 = vmatpush1.msra.mxu0 %v237
        %296 = vmatprep.subr.mxu0 0.0
        %297 = vmatpush1.msra.mxu0 %v238
        %298 = vmatprep.subr.mxu0 0.0
        %299 = vmatpush1.msra.mxu0 %v239
        %300 = vmatprep.subr.mxu0 0.0
        %301 = vmatpush1.msra.mxu0 %v240
        %302 = vmatprep.subr.mxu0 0.0
        %303 = vmatpush1.msra.mxu0 %v241
        %304 = vmatprep.subr.mxu0 0.0
        %305 = vmatpush1.msra.mxu0 %v242
        %306 = vmatprep.subr.mxu0 0.0
        %307 = vmatpush1.msra.mxu0 %v243
        %308 = vmatprep.mubr.f32.mxu0 %v181
        %309 = vmatmul.mubr.f32.gmra.mrb[0].mxu0 %v180
        %v310 = vpop.f32.mrb[0].mxu0
        %v311 = vadd.f32 0.0, %v310
        %v312 = vpop.f32.mrb[0].mxu0
        %313 = vmatprep.mubr.f32.mxu0 %v183
        %314 = vmatmul.mubr.f32.gmra.mrb[0].mxu0 %v182
        %v315 = vpop.f32.mrb[0].mxu0
        %v316 = vadd.f32 0.0, %v315
        %v317 = vpop.f32.mrb[0].mxu0
        %318 = vmatprep.mubr.f32.mxu0 %v185
        %319 = vmatmul.mubr.f32.gmra.mrb[0].mxu0 %v184
        %v320 = vpop.f32.mrb[0].mxu0
        %v321 = vadd.f32 0.0, %v320
        %v322 = vpop.f32.mrb[0].mxu0
        %323 = vmatprep.mubr.f32.mxu0 %v187
        %324 = vmatmul.mubr.f32.gmra.mrb[0].mxu0 %v186
        %v325 = vpop.f32.mrb[0].mxu0
        %v326 = vadd.f32 0.0, %v325
        %v327 = vpop.f32.mrb[0].mxu0
        %328 = vmatprep.mubr.f32.mxu0 %v189
        %329 = vmatmul.mubr.f32.gmra.mrb[0].mxu0 %v188
        %v330 = vpop.f32.mrb[0].mxu0
        %v331 = vadd.f32 0.0, %v330
        %v332 = vpop.f32.mrb[0].mxu0
        %333 = vmatprep.mubr.f32.mxu0 %v191
        %334 = vmatmul.mubr.f32.gmra.mrb[0].mxu0 %v190
        %v335 = vpop.f32.mrb[0].mxu0
        %v336 = vadd.f32 0.0, %v335
        %v337 = vpop.f32.mrb[0].mxu0
        %338 = vmatprep.mubr.f32.mxu0 %v193
        %339 = vmatmul.mubr.f32.gmra.mrb[0].mxu0 %v192
        %v340 = vpop.f32.mrb[0].mxu0
        %v341 = vadd.f32 0.0, %v340
        %v342 = vpop.f32.mrb[0].mxu0
        %343 = vmatprep.mubr.f32.mxu0 %v195
        %344 = vmatmul.mubr.f32.gmra.mrb[0].mxu0 %v194
        %v345 = vpop.f32.mrb[0].mxu0
        %v346 = vadd.f32 0.0, %v345
        %v347 = vpop.f32.mrb[0].mxu0
        %348 = vmatprep.mubr.f32.mxu0 %v197
        %349 = vmatmul.mubr.f32.gmra.mrb[0].mxu0 %v196
        %v350 = vpop.f32.mrb[0].mxu0
        %v351 = vadd.f32 0.0, %v350
        %v352 = vpop.f32.mrb[0].mxu0
        %353 = vmatprep.mubr.f32.mxu0 %v199
        %354 = vmatmul.mubr.f32.gmra.mrb[0].mxu0 %v198
        %v355 = vpop.f32.mrb[0].mxu0
        %v356 = vadd.f32 0.0, %v355
        %v357 = vpop.f32.mrb[0].mxu0
        %358 = vmatprep.mubr.f32.mxu0 %v201
        %359 = vmatmul.mubr.f32.gmra.mrb[0].mxu0 %v200
        %v360 = vpop.f32.mrb[0].mxu0
        %v361 = vadd.f32 0.0, %v360
        %v362 = vpop.f32.mrb[0].mxu0
        %363 = vmatprep.mubr.f32.mxu0 %v203
        %364 = vmatmul.mubr.f32.gmra.mrb[0].mxu0 %v202
        %v365 = vpop.f32.mrb[0].mxu0
        %v366 = vadd.f32 0.0, %v365
        %v367 = vpop.f32.mrb[0].mxu0
        %368 = vmatprep.mubr.f32.mxu0 %v205
        %369 = vmatmul.mubr.f32.gmra.mrb[0].mxu0 %v204
        %v370 = vpop.f32.mrb[0].mxu0
        %v371 = vadd.f32 0.0, %v370
        %v372 = vpop.f32.mrb[0].mxu0
        %373 = vmatprep.mubr.f32.mxu0 %v207
        %374 = vmatmul.mubr.f32.gmra.mrb[0].mxu0 %v206
        %v375 = vpop.f32.mrb[0].mxu0
        %v376 = vadd.f32 0.0, %v375
        %v377 = vpop.f32.mrb[0].mxu0
        %378 = vmatprep.mubr.f32.mxu0 %v209
        %379 = vmatmul.mubr.f32.gmra.mrb[0].mxu0 %v208
        %v380 = vpop.f32.mrb[0].mxu0
        %v381 = vadd.f32 0.0, %v380
        %v382 = vpop.f32.mrb[0].mxu0
        %383 = vmatprep.mubr.f32.mxu0 %v211
        %384 = vmatmul.mubr.f32.gmra.mrb[0].mxu0 %v210
        %v385 = vpop.f32.mrb[0].mxu0
        %v386 = vadd.f32 0.0, %v385
        %v387 = vpop.f32.mrb[0].mxu0
        %388 = vdwg.mxu0
        %v389 = vmul.f32 %v311, %v311
        %v390 = vmul.f32 %v316, %v316
        %v391 = vmul.f32 %v321, %v321
        %v392 = vmul.f32 %v326, %v326
        %v393 = vmul.f32 %v331, %v331
        %v394 = vmul.f32 %v336, %v336
        %v395 = vmul.f32 %v341, %v341
        %v396 = vmul.f32 %v346, %v346
        %v397 = vmul.f32 %v351, %v351
        %v398 = vmul.f32 %v356, %v356
        %v399 = vmul.f32 %v361, %v361
        %v400 = vmul.f32 %v366, %v366
        %v401 = vmul.f32 %v371, %v371
        %v402 = vmul.f32 %v376, %v376
        %v403 = vmul.f32 %v381, %v381
        %v404 = vmul.f32 %v386, %v386
        %405 = vadd.xlane.f32.xlu0 %v389
        %v406 = vpop.xlane.xlu0 %405
        %407 = vadd.xlane.f32.xlu0 %v390
        %v408 = vpop.xlane.xlu0 %407
        %409 = vadd.xlane.f32.xlu0 %v391
        %v410 = vpop.xlane.xlu0 %409
        %411 = vadd.xlane.f32.xlu0 %v392
        %v412 = vpop.xlane.xlu0 %411
        %413 = vadd.xlane.f32.xlu0 %v393
        %v414 = vpop.xlane.xlu0 %413
        %415 = vadd.xlane.f32.xlu0 %v394
        %v416 = vpop.xlane.xlu0 %415
        %417 = vadd.xlane.f32.xlu0 %v395
        %v418 = vpop.xlane.xlu0 %417
        %419 = vadd.xlane.f32.xlu0 %v396
        %v420 = vpop.xlane.xlu0 %419
        %421 = vadd.xlane.f32.xlu0 %v397
        %v422 = vpop.xlane.xlu0 %421
        %423 = vadd.xlane.f32.xlu0 %v398
        %v424 = vpop.xlane.xlu0 %423
        %425 = vadd.xlane.f32.xlu0 %v399
        %v426 = vpop.xlane.xlu0 %425
        %427 = vadd.xlane.f32.xlu0 %v400
        %v428 = vpop.xlane.xlu0 %427
        %429 = vadd.xlane.f32.xlu0 %v401
        %v430 = vpop.xlane.xlu0 %429
        %431 = vadd.xlane.f32.xlu0 %v402
        %v432 = vpop.xlane.xlu0 %431
        %433 = vadd.xlane.f32.xlu0 %v403
        %v434 = vpop.xlane.xlu0 %433
        %435 = vadd.xlane.f32.xlu0 %v404
        %v436 = vpop.xlane.xlu0 %435
        %v437 = vmax.f32 %v406, 1e-12
        %v438 = vmax.f32 %v408, 1e-12
        %v439 = vmax.f32 %v410, 1e-12
        %v440 = vmax.f32 %v412, 1e-12
        %v441 = vmax.f32 %v414, 1e-12
        %v442 = vmax.f32 %v416, 1e-12
        %v443 = vmax.f32 %v418, 1e-12
        %v444 = vmax.f32 %v420, 1e-12
        %v445 = vmax.f32 %v422, 1e-12
        %v446 = vmax.f32 %v424, 1e-12
        %v447 = vmax.f32 %v426, 1e-12
        %v448 = vmax.f32 %v428, 1e-12
        %v449 = vmax.f32 %v430, 1e-12
        %v450 = vmax.f32 %v432, 1e-12
        %v451 = vmax.f32 %v434, 1e-12
        %v452 = vmax.f32 %v436, 1e-12
        %v453 = vrsqrt.pop %v437
        %v454 = vrsqrt.pop %v438
        %v455 = vrsqrt.pop %v439
        %v456 = vrsqrt.pop %v440
        %v457 = vrsqrt.pop %v441
        %v458 = vrsqrt.pop %v442
        %v459 = vrsqrt.pop %v443
        %v460 = vrsqrt.pop %v444
        %v461 = vrsqrt.pop %v445
        %v462 = vrsqrt.pop %v446
        %v463 = vrsqrt.pop %v447
        %v464 = vrsqrt.pop %v448
        %v465 = vrsqrt.pop %v449
        %v466 = vrsqrt.pop %v450
        %v467 = vrsqrt.pop %v451
        %v468 = vrsqrt.pop %v452
        %v469 = vmul.f32 %v311, %v453
        %v470 = vmul.f32 %v316, %v454
        %v471 = vmul.f32 %v321, %v455
        %v472 = vmul.f32 %v326, %v456
        %v473 = vmul.f32 %v331, %v457
        %v474 = vmul.f32 %v336, %v458
        %v475 = vmul.f32 %v341, %v459
        %v476 = vmul.f32 %v346, %v460
        %v477 = vmul.f32 %v351, %v461
        %v478 = vmul.f32 %v356, %v462
        %v479 = vmul.f32 %v361, %v463
        %v480 = vmul.f32 %v366, %v464
        %v481 = vmul.f32 %v371, %v465
        %v482 = vmul.f32 %v376, %v466
        %v483 = vmul.f32 %v381, %v467
        %v484 = vmul.f32 %v386, %v468
        %485 = vst [vmem:[%s177] sm:$0xff] %v469
        %486 = vst [vmem:[%s177 + $0x8] sm:$0xff] %v470
        %487 = vst [vmem:[%s177 + $0x10] sm:$0xff] %v471
        %488 = vst [vmem:[%s177 + $0x18] sm:$0xff] %v472
        %489 = vst [vmem:[%s177 + $0x20] sm:$0xff] %v473
        %490 = vst [vmem:[%s177 + $0x28] sm:$0xff] %v474
        %491 = vst [vmem:[%s177 + $0x30] sm:$0xff] %v475
        %492 = vst [vmem:[%s177 + $0x38] sm:$0xff] %v476
        %493 = vst [vmem:[%s177 + $0x40] sm:$0xff] %v477
        %494 = vst [vmem:[%s177 + $0x48] sm:$0xff] %v478
        %495 = vst [vmem:[%s177 + $0x50] sm:$0xff] %v479
        %496 = vst [vmem:[%s177 + $0x58] sm:$0xff] %v480
        %497 = vst [vmem:[%s177 + $0x60] sm:$0xff] %v481
        %498 = vst [vmem:[%s177 + $0x68] sm:$0xff] %v482
        %499 = vst [vmem:[%s177 + $0x70] sm:$0xff] %v483
        %500 = vst [vmem:[%s177 + $0x78] sm:$0xff] %v484
        %s501 = sand.u32 %s75, 1
        %s502 = scalar_lea.sflag [#allocation4], %s501
        %s503 = sand.u32 %s75, 1
        %s504 = smul.addr %s503, 128
        %s505 = scalar_lea.vmem [#allocation7], %s504
        // Predicated region
        $region37: #{tpu_custom_call.1} parent=27 // pred_check
          %p506 = pneg %p85
        $region38: #{tpu_custom_call.1} parent=27 // pred_check_branch
          %508 = sbr.rel (%p506) target = $region40
        $region39: #{tpu_custom_call.1} parent=27 // pred_region
          %s509 = smul.u32 16, %s20
          %s511 = ssub.s32 2048, 2048
          %512 = vsyncadd %s502, %s511
          %s513 = smul.addr %s509, 128
          %s514 = scalar_lea.hbm %s2, %s513
          %s515 = sshll.u32 %s505, 4
          %s516 = int_to_ptr.vmem [resolvable:$true] %s515
          %521 = dma.vmem_to_hbm [thread:$0]  %s516, 2048, %s514, %s502, 128, 128, 8
        $region40: #{tpu_custom_call.1} parent=27 // pred_fallthru
          _
      $region28: #{tpu_custom_call.1} parent=5 // pred_fallthru
        _
      %p522 = scmp.le.s32.totalorder 2, %s15
      // Predicated region
      $region41: #{tpu_custom_call.1} parent=5 // pred_check
        %p523 = pneg %p522
      $region42: #{tpu_custom_call.1} parent=5 // pred_check_branch
        %525 = sbr.rel (%p523) target = $region44
      $region43: #{tpu_custom_call.1} parent=5 // pred_region
        %s526 = ssub.s32 %s15, 2
        // Predicated region
        $region45: #{tpu_custom_call.1} parent=43 // pred_check
          %p527 = pneg %p91
        $region46: #{tpu_custom_call.1} parent=43 // pred_check_branch
          %529 = sbr.rel (%p527) target = $region48
        $region47: #{tpu_custom_call.1} parent=43 // pred_region
          %s530 = sand.u32 %s76, 1
          %s531 = scalar_lea.sflag [#allocation4], %s530
          %s532 = sand.u32 %s76, 1
          %s533 = smul.addr %s532, 128
          %s534 = scalar_lea.vmem [#allocation7], %s533
          %535 = dma.done %s531, 2048
        $region48: #{tpu_custom_call.1} parent=43 // pred_fallthru
          _
      $region44: #{tpu_custom_call.1} parent=5 // pred_fallthru
        _
    $region6: #{tpu_custom_call.1} parent=1 // loop_footer
      %s19 = sadd.s32 1, %s15
    $region7: #{tpu_custom_call.1} parent=1 // loop_footer_branch
      %14 = sbr.rel target = $region3
    $region8: #{tpu_custom_call.1} parent=1 // loop_exit
      _
    %536 = vsyncpa [#allocation3], 1
    %s537 = scalar_lea.sflag [#allocation3], 1
    %538 = vsyncpa %s537, 1
    %539 = vsyncpa [#allocation6], 1
    %540 = vsyncpa [#allocation4], 1
    %s541 = scalar_lea.sflag [#allocation4], 1
    %542 = vsyncpa %s541, 1

</llo_original>
